<compile_context>
chip_gen: v7x
topology: tpu7x:2x2x1
jax: 0.10.0
libtpu: 0.0.40
codegen_flags: <defaults>
</compile_context>

<pallas_src>
import functools

import jax
import jax.numpy as jnp
from jax.experimental import pallas as pl
from jax.experimental.pallas import tpu as pltpu

_LANES = 128                      # TPU lane width
_MAX_SINGLE_ROWS = 2048           # single-block path: up to 2048*128 = 256K elements
_MULTI_BLOCK_ROWS = (2048, 1024, 512, 256)
_STEP_OVERHEAD_ROWS = 256         # ~0.35us grid-step overhead expressed in streamed rows
_VMEM_LIMIT = 32 * 1024 * 1024    # safe on v5e/v6e (128 MiB) and v7x (64 MiB) physical VMEM


# ----------------------------------------------------------------------------
# tiling / packing helpers
# ----------------------------------------------------------------------------
def _ceil_to(x, q):
    return -(-x // q) * q


def _plan(n):
    """Pick (rows, steps, block_rows) for n elements viewed as (rows, 128)."""
    rows_exact = -(-n // _LANES)
    if rows_exact <= _MAX_SINGLE_ROWS:
        # One full-extent block: no (8,128) alignment constraint, no grid overhead.
        return rows_exact, 1, rows_exact
    best = None
    for br in _MULTI_BLOCK_ROWS:
        rows = _ceil_to(rows_exact, br)
        steps = rows // br
        cost = rows + steps * _STEP_OVERHEAD_ROWS   # streamed rows + per-step overhead proxy
        if best is None or cost < best[0]:
            best = (cost, rows, steps, br)
    return best[1], best[2], best[3]


def _as_rows(x, rows, pad_value):
    """View flat x as (rows, 128) in its NATIVE dtype.

    Zero-copy (free reshape) when x.size == rows*128; otherwise a single tight pad copy.
    """
    flat = x.reshape(-1)
    need = rows * _LANES
    if flat.shape[0] != need:
        flat = jnp.pad(flat, (0, need - flat.shape[0]), constant_values=pad_value)
    return flat.reshape(rows, _LANES)


def _params():
    return pltpu.CompilerParams(dimension_semantics=("arbitrary",),
                                vmem_limit_bytes=_VMEM_LIMIT)


# ----------------------------------------------------------------------------
# offline (default) path:
#   losses = 0.5 * (labels * d^2 + (1 - labels) * relu(margin - d)^2)
#   return losses.mean()  (or .sum() if size_average=False)
# ----------------------------------------------------------------------------
def _offline_kernel(d_ref, l_ref, out_ref, *, margin, scale):
    step = pl.program_id(0)

    @pl.when(step == 0)
    def _():
        out_ref[...] = jnp.zeros_like(out_ref)

    d = d_ref[...].astype(jnp.float32)            # cast in-kernel (native dtype streamed)
    lab = l_ref[...].astype(jnp.float32)
    relu_md = jnp.maximum(margin - d, 0.0)
    sq_rel = relu_md * relu_md
    blk = sq_rel + lab * (d * d - sq_rel)         # == lab*d^2 + (1-lab)*relu^2
    # Lane-partial accumulation: vreg adds + one small sublane reduce per step; the
    # single cross-lane reduce happens once in the wrapper, not per grid step.
    out_ref[...] += jnp.sum(blk, axis=0, keepdims=True)

    @pl.when(step == pl.num_programs(0) - 1)
    def _():
        out_ref[...] = out_ref[...] * scale       # 0.5/n (mean) or 0.5 (sum)


def _contrastive_loss_offline(distances, labels, *, margin, size_average):
    n = int(distances.size)
    rows, steps, block_rows = _plan(n)

    d2 = _as_rows(distances, rows, 0)             # pad d=0, label=1  ->  zero loss contribution
    l2 = _as_rows(labels, rows, 1)

    scale = (0.5 / n) if size_average else 0.5
    kernel = functools.partial(_offline_kernel, margin=float(margin), scale=float(scale))
    tile = pl.BlockSpec((block_rows, _LANES), lambda i: (i, 0))

    out = pl.pallas_call(
        kernel,
        out_shape=jax.ShapeDtypeStruct((1, _LANES), jnp.float32),
        grid=(steps,),
        in_specs=[tile, tile],
        out_specs=pl.BlockSpec((1, _LANES), lambda i: (0, 0)),
        compiler_params=_params(),
    )(d2, l2)
    return jnp.sum(out)                           # single cross-lane reduce


# ----------------------------------------------------------------------------
# online path (masked reformulation of the boolean indexing):
#   negs = d[labels == neg_id]; poss = d[labels == pos_id]
#   negative_pairs = negs[negs < (poss.max() if len(poss) > 1 else negs.mean())]
#   positive_pairs = poss[poss > (negs.min() if len(negs) > 1 else poss.mean())]
#   loss = sum(positive_pairs^2) + sum(relu(margin - negative_pairs)^2)
# ----------------------------------------------------------------------------
def _online_fused_kernel(d_ref, l_ref, out_ref, *, margin, pos_id, neg_id):
    """Single-block case: stats, thresholds and masked loss in one sweep over VMEM."""
    d = d_ref[...].astype(jnp.float32)
    lab = l_ref[...]
    pos = lab == pos_id
    neg = lab == neg_id

    n_pos = jnp.sum(pos.astype(jnp.float32))
    n_neg = jnp.sum(neg.astype(jnp.float32))
    pos_sum = jnp.sum(jnp.where(pos, d, 0.0))
    neg_sum = jnp.sum(jnp.where(neg, d, 0.0))
    pos_max = jnp.max(jnp.where(pos, d, -jnp.inf))
    neg_min = jnp.min(jnp.where(neg, d, jnp.inf))
    pos_mean = pos_sum / jnp.maximum(n_pos, 1.0)  # guarded divide (documented deviation:
    neg_mean = neg_sum / jnp.maximum(n_neg, 1.0)  # empty class -> 0-mean threshold, no NaN)
    thr_neg = jnp.where(n_pos > 1.0, pos_max, neg_mean)
    thr_pos = jnp.where(n_neg > 1.0, neg_min, pos_mean)

    relu_md = jnp.maximum(margin - d, 0.0)
    loss = (jnp.sum(jnp.where(pos & (d > thr_pos), d * d, 0.0)) +
            jnp.sum(jnp.where(neg & (d < thr_neg), relu_md * relu_md, 0.0)))
    out_ref[...] = jnp.full((1, _LANES), loss, dtype=jnp.float32)


def _online_stats_kernel(d_ref, l_ref, npos_ref, nneg_ref, psum_ref, nsum_ref,
                         pmax_ref, nmin_ref, *, pos_id, neg_id):
    step = pl.program_id(0)

    @pl.when(step == 0)
    def _():
        npos_ref[...] = jnp.zeros_like(npos_ref)
        nneg_ref[...] = jnp.zeros_like(nneg_ref)
        psum_ref[...] = jnp.zeros_like(psum_ref)
        nsum_ref[...] = jnp.zeros_like(nsum_ref)
        pmax_ref[...] = jnp.full_like(pmax_ref, -jnp.inf)
        nmin_ref[...] = jnp.full_like(nmin_ref, jnp.inf)

    d = d_ref[...].astype(jnp.float32)
    lab = l_ref[...]
    pos = lab == pos_id
    neg = lab == neg_id

    # (1,128) lane-partial accumulators; the cross-lane reduce happens once in the wrapper.
    npos_ref[...] += jnp.sum(pos.astype(jnp.float32), axis=0, keepdims=True)
    nneg_ref[...] += jnp.sum(neg.astype(jnp.float32), axis=0, keepdims=True)
    psum_ref[...] += jnp.sum(jnp.where(pos, d, 0.0), axis=0, keepdims=True)
    nsum_ref[...] += jnp.sum(jnp.where(neg, d, 0.0), axis=0, keepdims=True)
    pmax_ref[...] = jnp.maximum(
        pmax_ref[...], jnp.max(jnp.where(pos, d, -jnp.inf), axis=0, keepdims=True))
    nmin_ref[...] = jnp.minimum(
        nmin_ref[...], jnp.min(jnp.where(neg, d, jnp.inf), axis=0, keepdims=True))


def _online_loss_kernel(thr_ref, d_ref, l_ref, out_ref, *, margin, pos_id, neg_id):
    step = pl.program_id(0)

    @pl.when(step == 0)
    def _():
        out_ref[...] = jnp.zeros_like(out_ref)

    thr_neg = thr_ref[0]                          # SMEM scalars (no VMEM broadcast rows)
    thr_pos = thr_ref[1]
    d = d_ref[...].astype(jnp.float32)
    lab = l_ref[...]
    pos_pair = (lab == pos_id) & (d > thr_pos)
    neg_pair = (lab == neg_id) & (d < thr_neg)
    relu_md = jnp.maximum(margin - d, 0.0)
    blk = jnp.where(pos_pair, d * d, 0.0) + jnp.where(neg_pair, relu_md * relu_md, 0.0)
    out_ref[...] += jnp.sum(blk, axis=0, keepdims=True)


def _contrastive_loss_online(distances, labels, *, margin, pos_id, neg_id):
    n = int(distances.size)
    rows, steps, block_rows = _plan(n)

    pad_label = min(pos_id, neg_id) - 1           # matches neither class -> padded elems ignored
    d2 = _as_rows(distances, rows, 0)
    l2 = _as_rows(labels, rows, pad_label)

    tile = pl.BlockSpec((block_rows, _LANES), lambda i: (i, 0))
    lane = pl.BlockSpec((1, _LANES), lambda i: (0, 0))
    lane_out = jax.ShapeDtypeStruct((1, _LANES), jnp.float32)

    if steps == 1:
        # Common case: everything fits in one VMEM block -> fully fused single pass.
        kernel = functools.partial(_online_fused_kernel, margin=float(margin),
                                   pos_id=int(pos_id), neg_id=int(neg_id))
        out = pl.pallas_call(
            kernel, out_shape=lane_out, grid=(1,),
            in_specs=[tile, tile], out_specs=lane,
            compiler_params=_params(),
        )(d2, l2)
        return out[0, 0]

    # ---- pass 1: global statistics (streamed) ----
    stats_kernel = functools.partial(_online_stats_kernel, pos_id=int(pos_id),
                                     neg_id=int(neg_id))
    npos, nneg, psum, nsum, pmax, nmin = pl.pallas_call(
        stats_kernel,
        out_shape=(lane_out,) * 6,
        grid=(steps,),
        in_specs=[tile, tile],
        out_specs=(lane,) * 6,
        compiler_params=_params(),
    )(d2, l2)

    n_pos, n_neg = jnp.sum(npos), jnp.sum(nneg)
    pos_mean = jnp.sum(psum) / jnp.maximum(n_pos, 1.0)   # guarded divides (no NaN)
    neg_mean = jnp.sum(nsum) / jnp.maximum(n_neg, 1.0)
    pos_max = jnp.max(pmax)
    neg_min = jnp.min(nmin)
    thr_neg = jnp.where(n_pos > 1.0, pos_max, neg_mean)  # keep negs with d <  thr_neg
    thr_pos = jnp.where(n_neg > 1.0, neg_min, pos_mean)  # keep poss with d >  thr_pos
    thr = jnp.stack([thr_neg, thr_pos]).astype(jnp.float32)

    # ---- pass 2: masked loss (thresholds ride as SMEM scalars) ----
    # TODO(synk): when d+labels fit a VMEM scratch, keep them resident from pass 1
    # (emit_pipeline into a resident buffer) instead of re-streaming from HBM.
    loss_kernel = functools.partial(_online_loss_kernel, margin=float(margin),
                                    pos_id=int(pos_id), neg_id=int(neg_id))
    out = pl.pallas_call(
        loss_kernel,
        out_shape=lane_out,
        grid=(steps,),
        in_specs=[pl.BlockSpec(memory_space=pltpu.MemorySpace.SMEM), tile, tile],
        out_specs=lane,
        compiler_params=_params(),
    )(thr, d2, l2)
    return jnp.sum(out)


# ----------------------------------------------------------------------------
# public wrapper (mirrors ContrastiveLoss.forward)
# ----------------------------------------------------------------------------
def contrastive_loss(distances, labels, *, margin=0.5, size_average=True,
                     online=False, pos_id=1, neg_id=0):
    distances = jnp.asarray(distances)
    labels = jnp.asarray(labels)
    if labels.dtype == jnp.bool_:                 # i1 blocks are awkward; tiny cast only if bool
        labels = labels.astype(jnp.int32)
    if online:
        return _contrastive_loss_online(distances, labels, margin=float(margin),
                                        pos_id=int(pos_id), neg_id=int(neg_id))
    return _contrastive_loss_offline(distances, labels, margin=float(margin),
                                     size_average=bool(size_average))


# ----------------------------------------------------------------------------
# pure-JAX references (for self-check)
# ----------------------------------------------------------------------------
def _ref_offline(distances, labels, margin=0.5, size_average=True):
    d = distances.astype(jnp.float32)
    lab = labels.astype(jnp.float32)
    losses = 0.5 * (lab * d ** 2 + (1.0 - lab) * jnp.maximum(margin - d, 0.0) ** 2)
    return jnp.mean(losses) if size_average else jnp.sum(losses)


def _ref_online(distances, labels, margin=0.5, pos_id=1, neg_id=0):
    d = distances.astype(jnp.float32)
    pos = labels == pos_id
    neg = labels == neg_id
    n_pos = jnp.sum(pos.astype(jnp.float32))
    n_neg = jnp.sum(neg.astype(jnp.float32))
    pos_mean = jnp.sum(jnp.where(pos, d, 0.0)) / jnp.maximum(n_pos, 1.0)
    neg_mean = jnp.sum(jnp.where(neg, d, 0.0)) / jnp.maximum(n_neg, 1.0)
    pos_max = jnp.max(jnp.where(pos, d, -jnp.inf))
    neg_min = jnp.min(jnp.where(neg, d, jnp.inf))
    thr_neg = jnp.where(n_pos > 1.0, pos_max, neg_mean)
    thr_pos = jnp.where(n_neg > 1.0, neg_min, pos_mean)
    relu_md = jnp.maximum(margin - d, 0.0)
    pos_loss = jnp.sum(jnp.where(pos & (d > thr_pos), d * d, 0.0))
    neg_loss = jnp.sum(jnp.where(neg & (d < thr_neg), relu_md * relu_md, 0.0))
    return pos_loss + neg_loss


if __name__ == "__main__":
    key = jax.random.PRNGKey(0)
    kd, kl = jax.random.split(key)

    # --- small test (single-block / fused paths) ---
    N = 8
    distances = jax.random.uniform(kd, (N,), dtype=jnp.float32)
    labels = jax.random.bernoulli(kl, 0.5, (N,)).astype(jnp.int32)  # 1 = pos pair, 0 = neg pair

    loss = jax.block_until_ready(
        contrastive_loss(distances, labels, margin=0.5, size_average=True, online=False))
    ref = _ref_offline(distances, labels, 0.5, True)
    assert jnp.allclose(loss, ref, rtol=1e-5, atol=1e-6), (loss, ref)

    loss_sum = jax.block_until_ready(
        contrastive_loss(distances, labels, margin=0.5, size_average=False, online=False))
    ref_sum = _ref_offline(distances, labels, 0.5, False)
    assert jnp.allclose(loss_sum, ref_sum, rtol=1e-5, atol=1e-6), (loss_sum, ref_sum)

    loss_online = jax.block_until_ready(
        contrastive_loss(distances, labels, margin=0.5, online=True))
    ref_online = _ref_online(distances, labels, 0.5, 1, 0)
    assert jnp.allclose(loss_online, ref_online, rtol=1e-5, atol=1e-5), (loss_online, ref_online)

    # --- medium ragged test (multi-block streaming paths) ---
    kd2, kl2 = jax.random.split(jax.random.PRNGKey(1))
    N2 = 300_000
    d_big = jax.random.uniform(kd2, (N2,), dtype=jnp.float32)
    l_big = jax.random.bernoulli(kl2, 0.5, (N2,)).astype(jnp.int32)

    loss_big = jax.block_until_ready(
        contrastive_loss(d_big, l_big, margin=0.5, size_average=True, online=False))
    ref_big = _ref_offline(d_big, l_big, 0.5, True)
    assert jnp.allclose(loss_big, ref_big, rtol=1e-4, atol=1e-6), (loss_big, ref_big)

    loss_big_online = jax.block_until_ready(
        contrastive_loss(d_big, l_big, margin=0.5, online=True))
    ref_big_online = _ref_online(d_big, l_big, 0.5, 1, 0)
    assert jnp.allclose(loss_big_online, ref_big_online, rtol=1e-4), (loss_big_online, ref_big_online)

    print("KERNEL_OK")
</pallas_src>

<mosaic_0001>
module attributes {stable_mosaic.version = 11 : i64} {
  func.func @_offline_kernel(%arg0: i32, %arg1: memref<1x128xf32, #tpu.memory_space<vmem>>, %arg2: memref<1x128xi32, #tpu.memory_space<vmem>>, %arg3: memref<1x128xf32, #tpu.memory_space<vmem>>) attributes {dimension_semantics = [#tpu.dimension_semantics<arbitrary>], iteration_bounds = array<i64: 1>, scalar_prefetch = 0 : i64, scratch_operands = 0 : i64, tpu.core_type = #tpu.core_type<tc>, window_params = [{transform_indices = @transform_0, window_bounds = array<i64: 1, 128>}, {transform_indices = @transform_1, window_bounds = array<i64: 1, 128>}, {pipeline_mode = #tpu.pipeline_mode<synchronous>, transform_indices = @transform_2, window_bounds = array<i64: 1, 128>}]} {
    %c0_i32 = arith.constant 0 : i32
    %0 = arith.cmpi eq, %arg0, %c0_i32 : i32
    %1 = arith.extui %0 : i1 to i32
    %c0_i32_0 = arith.constant 0 : i32
    %2 = arith.cmpi ne, %1, %c0_i32_0 : i32
    scf.if %2 {
      %cst_12 = arith.constant 0.000000e+00 : f32
      %23 = vector.broadcast %cst_12 : f32 to vector<1x128xf32>
      %c0_13 = arith.constant 0 : index
      %c0_14 = arith.constant 0 : index
      %24 = vector.load %arg3[%c0_13, %c0_14] : memref<1x128xf32, #tpu.memory_space<vmem>>, vector<1x128xf32>
      tpu.vector_store %arg3[%c0_13, %c0_14], %23 {strides = array<i32>} : memref<1x128xf32, #tpu.memory_space<vmem>>, vector<1x128xf32>,
    } else {
    }
    %c0 = arith.constant 0 : index
    %c0_1 = arith.constant 0 : index
    %3 = vector.load %arg1[%c0, %c0_1] : memref<1x128xf32, #tpu.memory_space<vmem>>, vector<1x128xf32>
    %c0_2 = arith.constant 0 : index
    %c0_3 = arith.constant 0 : index
    %4 = vector.load %arg2[%c0_2, %c0_3] : memref<1x128xi32, #tpu.memory_space<vmem>>, vector<1x128xi32>
    %5 = arith.sitofp %4 : vector<1x128xi32> to vector<1x128xf32>
    %cst = arith.constant 5.000000e-01 : f32
    %6 = vector.broadcast %cst : f32 to vector<1x128xf32>
    %7 = arith.subf %6, %3 : vector<1x128xf32>
    %cst_4 = arith.constant 0.000000e+00 : f32
    %8 = vector.broadcast %cst_4 : f32 to vector<1x128xf32>
    %9 = arith.maximumf %7, %8 : vector<1x128xf32>
    %10 = arith.mulf %9, %9 : vector<1x128xf32>
    %11 = arith.mulf %3, %3 : vector<1x128xf32>
    %12 = arith.subf %11, %10 : vector<1x128xf32>
    %13 = arith.mulf %5, %12 : vector<1x128xf32>
    %14 = arith.addf %10, %13 : vector<1x128xf32>
    %c0_5 = arith.constant 0 : index
    %c0_6 = arith.constant 0 : index
    %15 = vector.load %arg3[%c0_5, %c0_6] : memref<1x128xf32, #tpu.memory_space<vmem>>, vector<1x128xf32>
    %cst_7 = arith.constant dense<0.000000e+00> : vector<128xf32>
    %16 = vector.multi_reduction <add>, %14, %cst_7 [0] : vector<1x128xf32> to vector<128xf32>
    %17 = vector.shape_cast %16 : vector<128xf32> to vector<1x128xf32>
    %18 = arith.addf %15, %17 : vector<1x128xf32>
    %c0_8 = arith.constant 0 : index
    %c0_9 = arith.constant 0 : index
    %19 = vector.load %arg3[%c0_8, %c0_9] : memref<1x128xf32, #tpu.memory_space<vmem>>, vector<1x128xf32>
    tpu.vector_store %arg3[%c0_8, %c0_9], %18 {strides = array<i32>} : memref<1x128xf32, #tpu.memory_space<vmem>>, vector<1x128xf32>,
    %c0_i32_10 = arith.constant 0 : i32
    %20 = arith.cmpi eq, %arg0, %c0_i32_10 : i32
    %21 = arith.extui %20 : i1 to i32
    %c0_i32_11 = arith.constant 0 : i32
    %22 = arith.cmpi ne, %21, %c0_i32_11 : i32
    scf.if %22 {
      %c0_12 = arith.constant 0 : index
      %c0_13 = arith.constant 0 : index
      %23 = vector.load %arg3[%c0_12, %c0_13] : memref<1x128xf32, #tpu.memory_space<vmem>>, vector<1x128xf32>
      %cst_14 = arith.constant 6.250000e-02 : f32
      %24 = vector.broadcast %cst_14 : f32 to vector<1x128xf32>
      %25 = arith.mulf %23, %24 : vector<1x128xf32>
      %c0_15 = arith.constant 0 : index
      %c0_16 = arith.constant 0 : index
      %26 = vector.load %arg3[%c0_15, %c0_16] : memref<1x128xf32, #tpu.memory_space<vmem>>, vector<1x128xf32>
      tpu.vector_store %arg3[%c0_15, %c0_16], %25 {strides = array<i32>} : memref<1x128xf32, #tpu.memory_space<vmem>>, vector<1x128xf32>,
    } else {
    }
    return
  }
  func.func @transform_0(%arg0: i32) -> (i32, i32) {
    %c0_i32 = arith.constant 0 : i32
    %c0_i32_0 = arith.constant 0 : i32
    return %arg0, %c0_i32 : i32, i32
  }
  func.func @transform_1(%arg0: i32) -> (i32, i32) {
    %c0_i32 = arith.constant 0 : i32
    %c0_i32_0 = arith.constant 0 : i32
    return %arg0, %c0_i32 : i32, i32
  }
  func.func @transform_2(%arg0: i32) -> (i32, i32) {
    %c0_i32 = arith.constant 0 : i32
    %c0_i32_0 = arith.constant 0 : i32
    %c0_i32_1 = arith.constant 0 : i32
    return %c0_i32, %c0_i32_0 : i32, i32
  }
}

</mosaic_0001>

<llo_original>
// kernel: tpu_custom_call.1
$region0: #{tpu_custom_call.1}
  #allocation0 [shape = 'u32[]', space=smem, size = 0x4, offset = 0x4, fixed_abs, tag = 'smem constant byte address 0x4 - core index']
  #allocation1 [shape = 'u32[144,128]{1,0:T(1,128)}', space=vmem, size = 0x12000, scoped, tag = 'internal scratch']
  %s0 = inlined_call_operand.hbm [shape: f32[1,128], index: 0, kind: input, shape index: {}]
  %s1 = inlined_call_operand.vmem [shape: s32[1,128], index: 1, kind: input, shape index: {}]
  %s2 = inlined_call_operand.hbm [shape: f32[1,128], index: 2, kind: output, shape index: {}]
  %s3 = sld [smem:[#allocation0]]
  $region30: #{tpu_custom_call.1} parent=0
    _
  %s5 = ssub.s32 1, %s3
  %s6 = scalar_select 0, %s5, %s3
  $region1: #{tpu_custom_call.1} parent=0
    #allocation2 [shape = 'u8[512]{0}', space=vmem, size = 0x400, scoped, tag = 'input window, operand 0, single buffered']
    #allocation3 [shape = 's32[1]{0}', space=sflag, size = 0x4, scoped, tag = 'scoped memory for tpu_custom_call.1']
    #allocation4 [shape = 's32[1]{0}', space=sflag, size = 0x4, scoped, tag = 'scoped memory for tpu_custom_call.1']
    #allocation5 [shape = 'u8[512]{0}', space=vmem, size = 0x400, scoped, tag = 'output window, operand 0, single buffered']
    %7 = vsyncpa [#allocation3], 0
    %8 = vsyncpa [#allocation4], 0
    // Predicated region
    $region2: #{tpu_custom_call.1} parent=1 // pred_check
      _
    $region3: #{tpu_custom_call.1} parent=1 // pred_check_branch
      %10 = sbr.rel (0) target = $region5
    $region4: #{tpu_custom_call.1} parent=1 // pred_region
      %s12 = ssub.s32 16, 16
      %13 = vsyncadd [#allocation3], %s12
      %s15 = sshll.u32 [#allocation2], 4
      %s16 = int_to_ptr.vmem [resolvable:$true] %s15
      %18 = dma.hbm_to_vmem [thread:$0]  %s0, 16, %s16, [#allocation3]
    $region5: #{tpu_custom_call.1} parent=1 // pred_fallthru
      _
    // Predicated region
    $region6: #{tpu_custom_call.1} parent=1 // pred_check
      _
    $region7: #{tpu_custom_call.1} parent=1 // pred_check_branch
      %20 = sbr.rel (0) target = $region9
    $region8: #{tpu_custom_call.1} parent=1 // pred_region
      _
    $region9: #{tpu_custom_call.1} parent=1 // pred_fallthru
      _
    // Predicated region
    $region10: #{tpu_custom_call.1} parent=1 // pred_check
      _
    $region11: #{tpu_custom_call.1} parent=1 // pred_check_branch
      %22 = sbr.rel (0) target = $region13
    $region12: #{tpu_custom_call.1} parent=1 // pred_region
      %23 = dma.done [#allocation3], 16
    $region13: #{tpu_custom_call.1} parent=1 // pred_fallthru
      _
    %p24 = scmp.eq.s32.totalorder 0, 0
    // Predicated region
    $region14: #{tpu_custom_call.1} parent=1 // pred_check
      %p25 = pneg %p24
    $region15: #{tpu_custom_call.1} parent=1 // pred_check_branch
      %27 = sbr.rel (%p25) target = $region17
    $region16: #{tpu_custom_call.1} parent=1 // pred_region
      %28 = vst [vmem:[#allocation5] sm:$0x1] 0.0
    $region17: #{tpu_custom_call.1} parent=1 // pred_fallthru
      _
    %v29 = vld [vmem:[#allocation2] sm:$0x1]
    %v30 = vld [vmem:[%s1] sm:$0x1]
    %v31 = vcvt.s32.f32 %v30
    %v32 = vsub.f32 0.5, %v29
    %v33 = vmax.f32 %v32, 0.0
    %v34 = vmul.f32 %v33, %v33
    %v35 = vmul.f32 %v29, %v29
    %v36 = vsub.f32 %v35, %v34
    %v37 = vmul.f32 %v31, %v36
    %v38 = vadd.f32 %v34, %v37
    %v39 = vld [vmem:[#allocation5] sm:$0x1]
    %v40 = vadd.f32 %v38, 0.0
    %v41 = vadd.f32 %v39, %v40
    %42 = vst [vmem:[#allocation5] sm:$0x1] %v41
    // Predicated region
    $region18: #{tpu_custom_call.1} parent=1 // pred_check
      %p43 = pneg %p24
    $region19: #{tpu_custom_call.1} parent=1 // pred_check_branch
      %45 = sbr.rel (%p43) target = $region21
    $region20: #{tpu_custom_call.1} parent=1 // pred_region
      %v46 = vld [vmem:[#allocation5] sm:$0x1]
      %v47 = vmul.f32 %v46, 0.0625
      %48 = vst [vmem:[#allocation5] sm:$0x1] %v47
    $region21: #{tpu_custom_call.1} parent=1 // pred_fallthru
      _
    // Predicated region
    $region22: #{tpu_custom_call.1} parent=1 // pred_check
      _
    $region23: #{tpu_custom_call.1} parent=1 // pred_check_branch
      %50 = sbr.rel (0) target = $region25
    $region24: #{tpu_custom_call.1} parent=1 // pred_region
      %s52 = ssub.s32 16, 16
      %53 = vsyncadd [#allocation4], %s52
      %s55 = sshll.u32 [#allocation5], 4
      %s56 = int_to_ptr.vmem [resolvable:$true] %s55
      %58 = dma.vmem_to_hbm [thread:$0]  %s56, 16, %s2, [#allocation4]
    $region25: #{tpu_custom_call.1} parent=1 // pred_fallthru
      _
    // Predicated region
    $region26: #{tpu_custom_call.1} parent=1 // pred_check
      _
    $region27: #{tpu_custom_call.1} parent=1 // pred_check_branch
      %60 = sbr.rel (0) target = $region29
    $region28: #{tpu_custom_call.1} parent=1 // pred_region
      %61 = dma.done [#allocation4], 16
    $region29: #{tpu_custom_call.1} parent=1 // pred_fallthru
      _
    %62 = vsyncpa [#allocation3], 1
    %63 = vsyncpa [#allocation4], 1

</llo_original>
